<compile_context>
chip_gen: v5e
topology: v5e:2x2
jax: 0.10.0
libtpu: 0.0.40
codegen_flags: <defaults>
</compile_context>

<pallas_src>
import functools
from typing import NamedTuple

import jax
import jax.numpy as jnp
import numpy as np
from jax import lax
from jax.experimental import pallas as pl
from jax.experimental.pallas import tpu as pltpu

ARCHI = (64, 32, 32, 8)   # [flattened input, hidden, hidden, num classes]
TAU = 1.0
T_STEPS = 5


def _round_up(v, m):
    return (v + m - 1) // m * m


def _cdiv(a, b):
    return (a + b - 1) // b


class RONFusedParams(NamedTuple):
    w_big: jax.Array   # (S, S) fused block-structured recurrent weight (weight_dtype)
    coef: jax.Array    # (8, S) f32 rows [a1, a2, a3, c1, c2, c3, 0, 0]
    b_row: jax.Array   # (1, S) f32 packed biases
    w0_t: jax.Array    # (in_dim, H) f32 = Ws[0].T (hoisted x drive)
    in_dim: int
    H: int
    nh: int
    nc: int
    S: int


def build_fused_params(Ws, bs, gamma, eps, tau=TAU, weight_dtype=jnp.bfloat16):
    """Precompute fused weights + folded per-lane coefficients (do this once)."""
    f32 = jnp.float32
    L = len(Ws)
    nh = L - 1
    H = Ws[0].shape[0]
    nc = Ws[-1].shape[0]
    in_dim = Ws[0].shape[1]
    width = nh * H + nc
    S = _round_up(width, 128)
    tau = float(tau)

    # Fused per-step weight: slab lane layout [ y_0 | ... | y_{nh-1} | y_last | pad ].
    # Column block k*H:(k+1)*H produces g_k, columns nh*H: produce g_last.
    w_big = jnp.zeros((S, S), f32)
    for k in range(nh):
        if k >= 1:                                  # y_{k-1} @ Ws[k].T -> g_k
            w_big = w_big.at[(k - 1) * H:k * H, k * H:(k + 1) * H].set(Ws[k].T)
        nxt = Ws[k + 1]                             # y_{k+1} @ Ws[k+1]  -> g_k
        roff = (k + 1) * H
        w_big = w_big.at[roff:roff + nxt.shape[0], k * H:(k + 1) * H].set(nxt)
    w_big = w_big.at[(nh - 1) * H:nh * H, nh * H:nh * H + nc].set(Ws[-1].T)

    # Packed biases (added to the hoisted const slab in the wrapper).
    b_row = jnp.zeros((1, S), f32)
    for k in range(nh):
        b_row = b_row.at[0, k * H:(k + 1) * H].set(bs[k].astype(f32))
    b_row = b_row.at[0, nh * H:nh * H + nc].set(bs[nh].astype(f32))

    # Folded per-lane coefficients:
    #   z_new = a1*th + a2*z + a3*y
    #   y_new = c1*th + c2*z + c3*y
    def tile_hidden(vec_h):
        row = jnp.zeros((S,), f32)
        for k in range(nh):
            row = row.at[k * H:(k + 1) * H].set(vec_h)
        return row

    ome = jnp.asarray(1.0 - tau * eps, f32)          # (H,)
    tgam = jnp.asarray(tau * gamma, f32)             # (H,)
    a1 = tile_hidden(jnp.full((H,), tau, f32))       # tau            on hidden lanes
    a2 = tile_hidden(ome)                            # 1 - tau*eps
    a3 = tile_hidden(-tgam)                          # -tau*gamma
    lmask = jnp.zeros((S,), f32).at[nh * H:nh * H + nc].set(1.0)
    c1 = tau * a1 + lmask                            # tau^2 hidden, 1 on output lanes
    c2 = tau * a2                                    # tau*(1 - tau*eps)
    c3 = tile_hidden(jnp.ones((H,), f32)) + tau * a3  # 1 - tau^2*gamma

    coef = jnp.zeros((8, S), f32)
    for i, row in enumerate((a1, a2, a3, c1, c2, c3)):
        coef = coef.at[i, :].set(row)

    return RONFusedParams(w_big=w_big.astype(weight_dtype), coef=coef, b_row=b_row,
                          w0_t=jnp.asarray(Ws[0].T, f32),
                          in_dim=in_dim, H=H, nh=nh, nc=nc, S=S)


def pack_state(z_list, y_list, params, B_pad=None):
    """Pack per-layer state lists into lane-dense (B_pad, S) slabs."""
    f32 = jnp.float32
    H, nh, nc, S = params.H, params.nh, params.nc, params.S
    B = y_list[0].shape[0]
    B_pad = B if B_pad is None else B_pad
    z_slab = jnp.zeros((B_pad, S), f32)
    y_slab = jnp.zeros((B_pad, S), f32)
    for k in range(nh):
        z_slab = z_slab.at[:B, k * H:(k + 1) * H].set(z_list[k].astype(f32))
        y_slab = y_slab.at[:B, k * H:(k + 1) * H].set(y_list[k].astype(f32))
    y_slab = y_slab.at[:B, nh * H:nh * H + nc].set(y_list[nh].astype(f32))
    return z_slab, y_slab


def unpack_state(z_slab, y_slab, params, B):
    H, nh, nc = params.H, params.nh, params.nc
    z = [z_slab[:B, k * H:(k + 1) * H] for k in range(nh)]
    y = [y_slab[:B, k * H:(k + 1) * H] for k in range(nh)]
    y.append(y_slab[:B, nh * H:nh * H + nc])
    return z, y


def compute_const(x, params, B_pad=None):
    """Hoisted relaxation-invariant drive: pack(x @ W0.T) + biases, computed once
    per call by plain XLA (f32) instead of once per batch tile inside the kernel."""
    f32 = jnp.float32
    B = x.shape[0]
    x_flat = x.reshape(B, -1).astype(f32)
    assert x_flat.shape[1] == params.in_dim
    B_pad = B if B_pad is None else B_pad
    g0 = x_flat @ params.w0_t                        # (B, H) f32
    const = jnp.zeros((B_pad, params.S), f32).at[:B, :params.H].set(g0)
    return const + params.b_row


def _choose_tiling(B, block_b=None, max_block=1024, min_tiles=2):
    """Pick (block_b, B_pad): multiple-of-8 tiles, pad < one tile, and >=2 tiles
    when B >= 16 so the 'parallel' grid axis can split across the v7x dual TCs."""
    B8 = _round_up(max(B, 1), 8)
    if block_b is None:
        n_tiles = max(_cdiv(B8, max_block), min_tiles if B8 >= 16 else 1)
        n_tiles = max(min(n_tiles, B8 // 8), 1)
        block_b = _round_up(_cdiv(B8, n_tiles), 8)
    else:
        block_b = _round_up(block_b, 8)
    n_tiles = _cdiv(B8, block_b)
    return block_b, n_tiles * block_b


def _ron_kernel(T, const_ref, w_ref, coef_ref, z_in_ref, y_in_ref,
                z_out_ref, y_out_ref):
    """One batch tile: T relaxation steps on lane-dense 128-wide slabs."""
    w = w_ref[...]
    # Folded (1, S) coefficient rows — used via implicit sublane broadcast,
    # never materialized at (BM, S).
    a1 = coef_ref[0:1, :]
    a2 = coef_ref[1:2, :]
    a3 = coef_ref[2:3, :]
    c1 = coef_ref[3:4, :]
    c2 = coef_ref[4:5, :]
    c3 = coef_ref[5:6, :]

    z = z_in_ref[...]
    y = y_in_ref[...]

    def step(z, y):
        # ONE fused (BM,S)x(S,S) matmul per relaxation step (f32 accumulation).
        g = jnp.dot(y.astype(w.dtype), w, preferred_element_type=jnp.float32)
        th = jnp.tanh(g + const_ref[...])            # EUP; const streamed from VMEM
        z_new = a1 * th + a2 * z + a3 * y
        y_new = c1 * th + c2 * z + c3 * y
        return z_new, y_new

    if T <= 16:
        # Small static trip count: full unroll for LLO scheduling visibility.
        for _ in range(T):
            z, y = step(z, y)
    else:
        z, y = lax.fori_loop(0, T, lambda t, c: step(*c), (z, y), unroll=4)

    # Lane-dense stores: single unmasked writeback per slab.
    z_out_ref[...] = z
    y_out_ref[...] = y


def ron_relax_packed(const, z_slab, y_slab, params, T=T_STEPS, block_b=None,
                     vmem_limit_bytes=None):
    """Run T relaxation steps on packed (B_pad, S) slabs; z/y updated in place
    via input_output_aliases (keep state packed across repeated calls)."""
    B_pad, S = z_slab.shape
    assert const.shape == (B_pad, S) and y_slab.shape == (B_pad, S)
    assert S == params.S and B_pad % 8 == 0
    if block_b is None:
        # Largest multiple-of-8 divisor of B_pad <= 1024, preferring >=2 tiles.
        block_b = 8
        for d in range(8, min(B_pad, 1024) + 1, 8):
            if B_pad % d == 0 and (B_pad // d >= 2 or B_pad < 16):
                block_b = d
    assert B_pad % block_b == 0
    grid = (B_pad // block_b,)

    # Raise the scoped VMEM limit only if the estimated working set needs it
    # (v5e default is 16 MiB; never triggered at these sizes).
    if vmem_limit_bytes is None:
        need = (14 * block_b * S * 4                 # 5 slabs x2 buffers + spill headroom
                + 2 * S * S * params.w_big.dtype.itemsize + 2 * 8 * S * 4)
        if need > 12 * 1024 * 1024:
            vmem_limit_bytes = min(int(need * 1.5), 48 * 1024 * 1024)

    kernel = functools.partial(_ron_kernel, int(T))
    tile_spec = pl.BlockSpec((block_b, S), lambda i: (i, 0))

    z_out, y_out = pl.pallas_call(
        kernel,
        out_shape=(jax.ShapeDtypeStruct((B_pad, S), jnp.float32),
                   jax.ShapeDtypeStruct((B_pad, S), jnp.float32)),
        grid=grid,
        in_specs=[
            tile_spec,                                    # const (x drive + biases)
            pl.BlockSpec((S, S), lambda i: (0, 0)),       # fused weights (VMEM-resident)
            pl.BlockSpec((8, S), lambda i: (0, 0)),       # folded coefficient rows
            tile_spec,                                    # z state in
            tile_spec,                                    # y state in
        ],
        out_specs=(tile_spec, tile_spec),
        input_output_aliases={3: 0, 4: 1},                # in-place state update
        compiler_params=pltpu.CompilerParams(
            dimension_semantics=("parallel",),
            vmem_limit_bytes=vmem_limit_bytes),
    )(const, params.w_big, params.coef, z_slab, y_slab)
    return z_out, y_out


def ron_forward_pallas(x, Ws, bs, gamma, eps, z_init, y_init,
                       T=T_STEPS, tau=TAU, block_b=None,
                       weight_dtype=jnp.bfloat16, params=None):
    """Convenience wrapper: per-layer lists in / out (matches the module API)."""
    B = x.shape[0]
    if params is None:
        params = build_fused_params(Ws, bs, gamma, eps, tau=tau,
                                    weight_dtype=weight_dtype)
    block_b, B_pad = _choose_tiling(B, block_b)
    const = compute_const(x, params, B_pad)
    z_slab, y_slab = pack_state(z_init, y_init, params, B_pad)
    z_out, y_out = ron_relax_packed(const, z_slab, y_slab, params,
                                    T=T, block_b=block_b)
    return unpack_state(z_out, y_out, params, B)


def ron_forward_ref(x, Ws, bs, gamma, eps, z_init, y_init, T=T_STEPS, tau=TAU,
                    recur_dtype=jnp.float32):
    """Pure-JAX reference of the closed-form dynamics. `recur_dtype` emulates the
    kernel's weight dtype on the recurrent (in-loop) matmuls; the x @ W0.T drive
    stays f32, matching the hoisted const in the Pallas wrapper."""
    B = x.shape[0]
    x_flat = x.reshape(B, -1).astype(jnp.float32)
    L = len(Ws)
    nh = L - 1
    Wr = [w.astype(recur_dtype) for w in Ws]

    def rmm(a, b):
        return jnp.dot(a.astype(recur_dtype), b, preferred_element_type=jnp.float32)

    g0_x = x_flat @ Ws[0].T
    z = [zi.astype(jnp.float32) for zi in z_init]
    y = [yi.astype(jnp.float32) for yi in y_init]
    for _ in range(T):
        g = []
        for idx in range(nh):
            base = g0_x if idx == 0 else rmm(y[idx - 1], Wr[idx].T)
            g.append(base + bs[idx] + rmm(y[idx + 1], Wr[idx + 1]))
        g_last = rmm(y[nh - 1], Wr[L - 1].T) + bs[L - 1]
        z_new = [tau * jnp.tanh(g[i]) + z[i] - tau * eps * z[i] - tau * gamma * y[i]
                 for i in range(nh)]
        y = [y[i] + tau * z_new[i] for i in range(nh)] + [jnp.tanh(g_last)]
        z = z_new
    return z, y


def init_params(key, archi):
    """Deterministic init matching the module's shapes (PyTorch-style uniform)."""
    L = len(archi) - 1
    keys = jax.random.split(key, 2 * L + 2)
    Ws, bs = [], []
    for idx in range(L):
        bound = 1.0 / np.sqrt(archi[idx])
        Ws.append(jax.random.uniform(keys[2 * idx], (archi[idx + 1], archi[idx]),
                                     jnp.float32, -bound, bound))
        bs.append(jax.random.uniform(keys[2 * idx + 1], (archi[idx + 1],),
                                     jnp.float32, -bound, bound))
    gamma = jax.random.uniform(keys[-2], (archi[1],), jnp.float32, 0.0, 1.0)
    eps = jax.random.uniform(keys[-1], (archi[1],), jnp.float32, 0.0, 1.0)
    return Ws, bs, gamma, eps


def init_neurons(mbs, archi):
    nh = len(archi) - 2
    z = [jnp.zeros((mbs, archi[1]), jnp.float32) for _ in range(nh)]
    y = [jnp.zeros((mbs, archi[1]), jnp.float32) for _ in range(nh)]
    y.append(jnp.zeros((mbs, archi[-1]), jnp.float32))
    return z, y


if __name__ == "__main__":
    key = jax.random.PRNGKey(0)
    kx, kp = jax.random.split(key)

    B = 2
    x = jax.random.normal(kx, (B, 1, 8, 8), jnp.float32)   # NCHW, flattens to 64
    Ws, bs, gamma, eps = init_params(kp, ARCHI)
    z0, y0 = init_neurons(B, ARCHI)

    # Strict check: f32 weights inside the kernel vs. the plain f32 reference.
    z_f32, y_f32 = ron_forward_pallas(x, Ws, bs, gamma, eps, z0, y0,
                                      T=T_STEPS, tau=TAU,
                                      weight_dtype=jnp.float32)
    jax.block_until_ready(z_f32)
    jax.block_until_ready(y_f32)
    z_ref, y_ref = ron_forward_ref(x, Ws, bs, gamma, eps, z0, y0,
                                   T=T_STEPS, tau=TAU)
    for a, b_ in zip(z_f32 + y_f32, z_ref + y_ref):
        np.testing.assert_allclose(np.asarray(a), np.asarray(b_),
                                   rtol=1e-5, atol=1e-5)

    # Default fast path: bf16 recurrent weights (MXU-native) with f32 accumulation,
    # checked against a reference that applies the same bf16 rounding.
    z_bf, y_bf = ron_forward_pallas(x, Ws, bs, gamma, eps, z0, y0,
                                    T=T_STEPS, tau=TAU)
    jax.block_until_ready(z_bf)
    jax.block_until_ready(y_bf)
    z_refb, y_refb = ron_forward_ref(x, Ws, bs, gamma, eps, z0, y0,
                                     T=T_STEPS, tau=TAU,
                                     recur_dtype=jnp.bfloat16)
    for a, b_ in zip(z_bf + y_bf, z_refb + y_refb):
        np.testing.assert_allclose(np.asarray(a), np.asarray(b_),
                                   rtol=2e-2, atol=2e-2)

    print("KERNEL_OK")
</pallas_src>

<mosaic_0001>
module attributes {stable_mosaic.version = 11 : i64} {
  func.func @_ron_kernel(%arg0: i32, %arg1: memref<8x128xf32, #tpu.memory_space<vmem>>, %arg2: memref<128x128xf32, #tpu.memory_space<vmem>>, %arg3: memref<8x128xf32, #tpu.memory_space<vmem>>, %arg4: memref<8x128xf32, #tpu.memory_space<vmem>>, %arg5: memref<8x128xf32, #tpu.memory_space<vmem>>, %arg6: memref<8x128xf32, #tpu.memory_space<vmem>>, %arg7: memref<8x128xf32, #tpu.memory_space<vmem>>) attributes {dimension_semantics = [#tpu.dimension_semantics<parallel>], iteration_bounds = array<i64: 1>, scalar_prefetch = 0 : i64, scratch_operands = 0 : i64, tpu.core_type = #tpu.core_type<tc>, window_params = [{transform_indices = @transform_0, window_bounds = array<i64: 8, 128>}, {pipeline_mode = #tpu.pipeline_mode<synchronous>, transform_indices = @transform_1, window_bounds = array<i64: 128, 128>}, {pipeline_mode = #tpu.pipeline_mode<synchronous>, transform_indices = @transform_2, window_bounds = array<i64: 8, 128>}, {transform_indices = @transform_3, window_bounds = array<i64: 8, 128>}, {transform_indices = @transform_4, window_bounds = array<i64: 8, 128>}, {transform_indices = @transform_5, window_bounds = array<i64: 8, 128>}, {transform_indices = @transform_6, window_bounds = array<i64: 8, 128>}]} {
    %c0 = arith.constant 0 : index
    %c0_0 = arith.constant 0 : index
    %0 = vector.load %arg2[%c0, %c0_0] : memref<128x128xf32, #tpu.memory_space<vmem>>, vector<128x128xf32>
    %c0_1 = arith.constant 0 : index
    %c0_2 = arith.constant 0 : index
    %1 = vector.load %arg3[%c0_1, %c0_2] : memref<8x128xf32, #tpu.memory_space<vmem>>, vector<1x128xf32>
    %c1 = arith.constant 1 : index
    %c0_3 = arith.constant 0 : index
    %2 = vector.load %arg3[%c1, %c0_3] : memref<8x128xf32, #tpu.memory_space<vmem>>, vector<1x128xf32>
    %c2 = arith.constant 2 : index
    %c0_4 = arith.constant 0 : index
    %3 = vector.load %arg3[%c2, %c0_4] : memref<8x128xf32, #tpu.memory_space<vmem>>, vector<1x128xf32>
    %c3 = arith.constant 3 : index
    %c0_5 = arith.constant 0 : index
    %4 = vector.load %arg3[%c3, %c0_5] : memref<8x128xf32, #tpu.memory_space<vmem>>, vector<1x128xf32>
    %c4 = arith.constant 4 : index
    %c0_6 = arith.constant 0 : index
    %5 = vector.load %arg3[%c4, %c0_6] : memref<8x128xf32, #tpu.memory_space<vmem>>, vector<1x128xf32>
    %c5 = arith.constant 5 : index
    %c0_7 = arith.constant 0 : index
    %6 = vector.load %arg3[%c5, %c0_7] : memref<8x128xf32, #tpu.memory_space<vmem>>, vector<1x128xf32>
    %c0_8 = arith.constant 0 : index
    %c0_9 = arith.constant 0 : index
    %7 = vector.load %arg4[%c0_8, %c0_9] : memref<8x128xf32, #tpu.memory_space<vmem>>, vector<8x128xf32>
    %c0_10 = arith.constant 0 : index
    %c0_11 = arith.constant 0 : index
    %8 = vector.load %arg5[%c0_10, %c0_11] : memref<8x128xf32, #tpu.memory_space<vmem>>, vector<8x128xf32>
    %cst = arith.constant dense<0.000000e+00> : vector<8x128xf32>
    %9 = tpu.matmul %8, %0, %cst {dimension_numbers = #tpu.dot_dimension_numbers<[1], [0], [0], [1], [0, 0, 1, 1], [], []>} : vector<8x128xf32>, vector<128x128xf32>, vector<8x128xf32> -> vector<8x128xf32>
    %c0_12 = arith.constant 0 : index
    %c0_13 = arith.constant 0 : index
    %10 = vector.load %arg1[%c0_12, %c0_13] : memref<8x128xf32, #tpu.memory_space<vmem>>, vector<8x128xf32>
    %11 = arith.addf %9, %10 : vector<8x128xf32>
    %12 = math.tanh %11 : vector<8x128xf32>
    %13 = vector.broadcast %1 : vector<1x128xf32> to vector<8x128xf32>
    %14 = arith.mulf %13, %12 : vector<8x128xf32>
    %15 = vector.broadcast %2 : vector<1x128xf32> to vector<8x128xf32>
    %16 = arith.mulf %15, %7 : vector<8x128xf32>
    %17 = arith.addf %14, %16 : vector<8x128xf32>
    %18 = vector.broadcast %3 : vector<1x128xf32> to vector<8x128xf32>
    %19 = arith.mulf %18, %8 : vector<8x128xf32>
    %20 = arith.addf %17, %19 : vector<8x128xf32>
    %21 = vector.broadcast %4 : vector<1x128xf32> to vector<8x128xf32>
    %22 = arith.mulf %21, %12 : vector<8x128xf32>
    %23 = vector.broadcast %5 : vector<1x128xf32> to vector<8x128xf32>
    %24 = arith.mulf %23, %7 : vector<8x128xf32>
    %25 = arith.addf %22, %24 : vector<8x128xf32>
    %26 = vector.broadcast %6 : vector<1x128xf32> to vector<8x128xf32>
    %27 = arith.mulf %26, %8 : vector<8x128xf32>
    %28 = arith.addf %25, %27 : vector<8x128xf32>
    %cst_14 = arith.constant dense<0.000000e+00> : vector<8x128xf32>
    %29 = tpu.matmul %28, %0, %cst_14 {dimension_numbers = #tpu.dot_dimension_numbers<[1], [0], [0], [1], [0, 0, 1, 1], [], []>} : vector<8x128xf32>, vector<128x128xf32>, vector<8x128xf32> -> vector<8x128xf32>
    %c0_15 = arith.constant 0 : index
    %c0_16 = arith.constant 0 : index
    %30 = vector.load %arg1[%c0_15, %c0_16] : memref<8x128xf32, #tpu.memory_space<vmem>>, vector<8x128xf32>
    %31 = arith.addf %29, %30 : vector<8x128xf32>
    %32 = math.tanh %31 : vector<8x128xf32>
    %33 = vector.broadcast %1 : vector<1x128xf32> to vector<8x128xf32>
    %34 = arith.mulf %33, %32 : vector<8x128xf32>
    %35 = vector.broadcast %2 : vector<1x128xf32> to vector<8x128xf32>
    %36 = arith.mulf %35, %20 : vector<8x128xf32>
    %37 = arith.addf %34, %36 : vector<8x128xf32>
    %38 = vector.broadcast %3 : vector<1x128xf32> to vector<8x128xf32>
    %39 = arith.mulf %38, %28 : vector<8x128xf32>
    %40 = arith.addf %37, %39 : vector<8x128xf32>
    %41 = vector.broadcast %4 : vector<1x128xf32> to vector<8x128xf32>
    %42 = arith.mulf %41, %32 : vector<8x128xf32>
    %43 = vector.broadcast %5 : vector<1x128xf32> to vector<8x128xf32>
    %44 = arith.mulf %43, %20 : vector<8x128xf32>
    %45 = arith.addf %42, %44 : vector<8x128xf32>
    %46 = vector.broadcast %6 : vector<1x128xf32> to vector<8x128xf32>
    %47 = arith.mulf %46, %28 : vector<8x128xf32>
    %48 = arith.addf %45, %47 : vector<8x128xf32>
    %cst_17 = arith.constant dense<0.000000e+00> : vector<8x128xf32>
    %49 = tpu.matmul %48, %0, %cst_17 {dimension_numbers = #tpu.dot_dimension_numbers<[1], [0], [0], [1], [0, 0, 1, 1], [], []>} : vector<8x128xf32>, vector<128x128xf32>, vector<8x128xf32> -> vector<8x128xf32>
    %c0_18 = arith.constant 0 : index
    %c0_19 = arith.constant 0 : index
    %50 = vector.load %arg1[%c0_18, %c0_19] : memref<8x128xf32, #tpu.memory_space<vmem>>, vector<8x128xf32>
    %51 = arith.addf %49, %50 : vector<8x128xf32>
    %52 = math.tanh %51 : vector<8x128xf32>
    %53 = vector.broadcast %1 : vector<1x128xf32> to vector<8x128xf32>
    %54 = arith.mulf %53, %52 : vector<8x128xf32>
    %55 = vector.broadcast %2 : vector<1x128xf32> to vector<8x128xf32>
    %56 = arith.mulf %55, %40 : vector<8x128xf32>
    %57 = arith.addf %54, %56 : vector<8x128xf32>
    %58 = vector.broadcast %3 : vector<1x128xf32> to vector<8x128xf32>
    %59 = arith.mulf %58, %48 : vector<8x128xf32>
    %60 = arith.addf %57, %59 : vector<8x128xf32>
    %61 = vector.broadcast %4 : vector<1x128xf32> to vector<8x128xf32>
    %62 = arith.mulf %61, %52 : vector<8x128xf32>
    %63 = vector.broadcast %5 : vector<1x128xf32> to vector<8x128xf32>
    %64 = arith.mulf %63, %40 : vector<8x128xf32>
    %65 = arith.addf %62, %64 : vector<8x128xf32>
    %66 = vector.broadcast %6 : vector<1x128xf32> to vector<8x128xf32>
    %67 = arith.mulf %66, %48 : vector<8x128xf32>
    %68 = arith.addf %65, %67 : vector<8x128xf32>
    %cst_20 = arith.constant dense<0.000000e+00> : vector<8x128xf32>
    %69 = tpu.matmul %68, %0, %cst_20 {dimension_numbers = #tpu.dot_dimension_numbers<[1], [0], [0], [1], [0, 0, 1, 1], [], []>} : vector<8x128xf32>, vector<128x128xf32>, vector<8x128xf32> -> vector<8x128xf32>
    %c0_21 = arith.constant 0 : index
    %c0_22 = arith.constant 0 : index
    %70 = vector.load %arg1[%c0_21, %c0_22] : memref<8x128xf32, #tpu.memory_space<vmem>>, vector<8x128xf32>
    %71 = arith.addf %69, %70 : vector<8x128xf32>
    %72 = math.tanh %71 : vector<8x128xf32>
    %73 = vector.broadcast %1 : vector<1x128xf32> to vector<8x128xf32>
    %74 = arith.mulf %73, %72 : vector<8x128xf32>
    %75 = vector.broadcast %2 : vector<1x128xf32> to vector<8x128xf32>
    %76 = arith.mulf %75, %60 : vector<8x128xf32>
    %77 = arith.addf %74, %76 : vector<8x128xf32>
    %78 = vector.broadcast %3 : vector<1x128xf32> to vector<8x128xf32>
    %79 = arith.mulf %78, %68 : vector<8x128xf32>
    %80 = arith.addf %77, %79 : vector<8x128xf32>
    %81 = vector.broadcast %4 : vector<1x128xf32> to vector<8x128xf32>
    %82 = arith.mulf %81, %72 : vector<8x128xf32>
    %83 = vector.broadcast %5 : vector<1x128xf32> to vector<8x128xf32>
    %84 = arith.mulf %83, %60 : vector<8x128xf32>
    %85 = arith.addf %82, %84 : vector<8x128xf32>
    %86 = vector.broadcast %6 : vector<1x128xf32> to vector<8x128xf32>
    %87 = arith.mulf %86, %68 : vector<8x128xf32>
    %88 = arith.addf %85, %87 : vector<8x128xf32>
    %cst_23 = arith.constant dense<0.000000e+00> : vector<8x128xf32>
    %89 = tpu.matmul %88, %0, %cst_23 {dimension_numbers = #tpu.dot_dimension_numbers<[1], [0], [0], [1], [0, 0, 1, 1], [], []>} : vector<8x128xf32>, vector<128x128xf32>, vector<8x128xf32> -> vector<8x128xf32>
    %c0_24 = arith.constant 0 : index
    %c0_25 = arith.constant 0 : index
    %90 = vector.load %arg1[%c0_24, %c0_25] : memref<8x128xf32, #tpu.memory_space<vmem>>, vector<8x128xf32>
    %91 = arith.addf %89, %90 : vector<8x128xf32>
    %92 = math.tanh %91 : vector<8x128xf32>
    %93 = vector.broadcast %1 : vector<1x128xf32> to vector<8x128xf32>
    %94 = arith.mulf %93, %92 : vector<8x128xf32>
    %95 = vector.broadcast %2 : vector<1x128xf32> to vector<8x128xf32>
    %96 = arith.mulf %95, %80 : vector<8x128xf32>
    %97 = arith.addf %94, %96 : vector<8x128xf32>
    %98 = vector.broadcast %3 : vector<1x128xf32> to vector<8x128xf32>
    %99 = arith.mulf %98, %88 : vector<8x128xf32>
    %100 = arith.addf %97, %99 : vector<8x128xf32>
    %101 = vector.broadcast %4 : vector<1x128xf32> to vector<8x128xf32>
    %102 = arith.mulf %101, %92 : vector<8x128xf32>
    %103 = vector.broadcast %5 : vector<1x128xf32> to vector<8x128xf32>
    %104 = arith.mulf %103, %80 : vector<8x128xf32>
    %105 = arith.addf %102, %104 : vector<8x128xf32>
    %106 = vector.broadcast %6 : vector<1x128xf32> to vector<8x128xf32>
    %107 = arith.mulf %106, %88 : vector<8x128xf32>
    %108 = arith.addf %105, %107 : vector<8x128xf32>
    %c0_26 = arith.constant 0 : index
    %c0_27 = arith.constant 0 : index
    %109 = vector.load %arg6[%c0_26, %c0_27] : memref<8x128xf32, #tpu.memory_space<vmem>>, vector<8x128xf32>
    tpu.vector_store %arg6[%c0_26, %c0_27], %100 {strides = array<i32>} : memref<8x128xf32, #tpu.memory_space<vmem>>, vector<8x128xf32>,
    %c0_28 = arith.constant 0 : index
    %c0_29 = arith.constant 0 : index
    %110 = vector.load %arg7[%c0_28, %c0_29] : memref<8x128xf32, #tpu.memory_space<vmem>>, vector<8x128xf32>
    tpu.vector_store %arg7[%c0_28, %c0_29], %108 {strides = array<i32>} : memref<8x128xf32, #tpu.memory_space<vmem>>, vector<8x128xf32>,
    return
  }
  func.func @transform_0(%arg0: i32) -> (i32, i32) {
    %c0_i32 = arith.constant 0 : i32
    %c0_i32_0 = arith.constant 0 : i32
    return %arg0, %c0_i32 : i32, i32
  }
  func.func @transform_1(%arg0: i32) -> (i32, i32) {
    %c0_i32 = arith.constant 0 : i32
    %c0_i32_0 = arith.constant 0 : i32
    %c0_i32_1 = arith.constant 0 : i32
    return %c0_i32, %c0_i32_0 : i32, i32
  }
  func.func @transform_2(%arg0: i32) -> (i32, i32) {
    %c0_i32 = arith.constant 0 : i32
    %c0_i32_0 = arith.constant 0 : i32
    %c0_i32_1 = arith.constant 0 : i32
    return %c0_i32, %c0_i32_0 : i32, i32
  }
  func.func @transform_3(%arg0: i32) -> (i32, i32) {
    %c0_i32 = arith.constant 0 : i32
    %c0_i32_0 = arith.constant 0 : i32
    return %arg0, %c0_i32 : i32, i32
  }
  func.func @transform_4(%arg0: i32) -> (i32, i32) {
    %c0_i32 = arith.constant 0 : i32
    %c0_i32_0 = arith.constant 0 : i32
    return %arg0, %c0_i32 : i32, i32
  }
  func.func @transform_5(%arg0: i32) -> (i32, i32) {
    %c0_i32 = arith.constant 0 : i32
    %c0_i32_0 = arith.constant 0 : i32
    return %arg0, %c0_i32 : i32, i32
  }
  func.func @transform_6(%arg0: i32) -> (i32, i32) {
    %c0_i32 = arith.constant 0 : i32
    %c0_i32_0 = arith.constant 0 : i32
    return %arg0, %c0_i32 : i32, i32
  }
}

</mosaic_0001>

<llo_original>
// kernel: tpu_custom_call.1
$region0: #{tpu_custom_call.1}
  #allocation0 [shape = 'u32[]', space=smem, size = 0x4, offset = 0x4, fixed_abs, tag = 'smem constant byte address 0x4 - core index']
  #allocation1 [shape = 'u32[72,128]{1,0:T(1,128)}', space=vmem, size = 0x9000, scoped, tag = 'internal scratch']
  %s0 = inlined_call_operand.vmem [shape: f32[8,128], index: 0, kind: input, shape index: {}]
  %s1 = inlined_call_operand.hbm [shape: f32[128,128], index: 1, kind: input, shape index: {}]
  %s2 = inlined_call_operand.vmem [shape: f32[8,128], index: 2, kind: input, shape index: {}]
  %s3 = inlined_call_operand.hbm [shape: f32[8,128], index: 3, kind: input, shape index: {}, may-alias: {3,5}]
  %s4 = inlined_call_operand.hbm [shape: f32[8,128], index: 4, kind: input, shape index: {}, may-alias: {4,6}]
  %s5 = inlined_call_operand.hbm [shape: f32[8,128], index: 5, kind: output, shape index: {0}, may-alias: {3,5}]
  %s6 = inlined_call_operand.hbm [shape: f32[8,128], index: 6, kind: output, shape index: {1}, may-alias: {4,6}]
  %7 = xla_tuple %s5, %s6
  %s8 = sld [smem:[#allocation0]]
  $region50: #{tpu_custom_call.1} parent=0
    _
  %s10 = ssub.s32 1, %s8
  %s11 = scalar_select 0, %s10, %s8
  $region1: #{tpu_custom_call.1} parent=0
    #allocation2 [shape = 'u8[65536]{0}', space=vmem, size = 0x10000, scoped, tag = 'input window, operand 1, single buffered']
    #allocation3 [shape = 's32[1]{0}', space=sflag, size = 0x4, scoped, tag = 'scoped memory for tpu_custom_call.1']
    #allocation4 [shape = 's32[1]{0}', space=sflag, size = 0x4, scoped, tag = 'scoped memory for tpu_custom_call.1']
    #allocation5 [shape = 'u8[4096]{0}', space=vmem, size = 0x1000, scoped, tag = 'input window, operand 3, single buffered']
    #allocation6 [shape = 's32[1]{0}', space=sflag, size = 0x4, scoped, tag = 'scoped memory for tpu_custom_call.1']
    #allocation7 [shape = 'u8[4096]{0}', space=vmem, size = 0x1000, scoped, tag = 'input window, operand 4, single buffered']
    #allocation8 [shape = 'u8[4096]{0}', space=vmem, size = 0x1000, scoped, tag = 'output window, operand 0, single buffered']
    #allocation9 [shape = 'u8[4096]{0}', space=vmem, size = 0x1000, scoped, tag = 'output window, operand 1, single buffered']
    #allocation10 [shape = 's32[1]{0}', space=sflag, size = 0x4, scoped, tag = 'scoped memory for tpu_custom_call.1']
    %12 = vsyncpa [#allocation3], 0
    %13 = vsyncpa [#allocation6], 0
    %14 = vsyncpa [#allocation4], 0
    %15 = vsyncpa [#allocation10], 0
    // Predicated region
    $region2: #{tpu_custom_call.1} parent=1 // pred_check
      _
    $region3: #{tpu_custom_call.1} parent=1 // pred_check_branch
      %17 = sbr.rel (0) target = $region5
    $region4: #{tpu_custom_call.1} parent=1 // pred_region
      _
    $region5: #{tpu_custom_call.1} parent=1 // pred_fallthru
      _
    // Predicated region
    $region6: #{tpu_custom_call.1} parent=1 // pred_check
      _
    $region7: #{tpu_custom_call.1} parent=1 // pred_check_branch
      %19 = sbr.rel (0) target = $region9
    $region8: #{tpu_custom_call.1} parent=1 // pred_region
      %21 = vsyncadd [#allocation3], 0
      %s22 = sshll.u32 %s1, 4
      %s23 = int_to_ptr.hbm [resolvable:$true] %s22
      %s24 = sshll.u32 [#allocation2], 4
      %s25 = int_to_ptr.vmem [resolvable:$true] %s24
      %30 = dma.hbm_to_vmem [thread:$0]  %s23, 2048, %s25, [#allocation3], 128, 128, 8
    $region9: #{tpu_custom_call.1} parent=1 // pred_fallthru
      _
    // Predicated region
    $region10: #{tpu_custom_call.1} parent=1 // pred_check
      _
    $region11: #{tpu_custom_call.1} parent=1 // pred_check_branch
      %32 = sbr.rel (0) target = $region13
    $region12: #{tpu_custom_call.1} parent=1 // pred_region
      _
    $region13: #{tpu_custom_call.1} parent=1 // pred_fallthru
      _
    // Predicated region
    $region14: #{tpu_custom_call.1} parent=1 // pred_check
      _
    $region15: #{tpu_custom_call.1} parent=1 // pred_check_branch
      %34 = sbr.rel (0) target = $region17
    $region16: #{tpu_custom_call.1} parent=1 // pred_region
      %36 = vsyncadd [#allocation6], 0
      %s38 = sshll.u32 %s3, 4
      %s39 = int_to_ptr.hbm [resolvable:$true] %s38
      %s40 = sshll.u32 [#allocation5], 4
      %s41 = int_to_ptr.vmem [resolvable:$true] %s40
      %43 = dma.hbm_to_vmem [thread:$0]  %s39, 128, %s41, [#allocation6]
    $region17: #{tpu_custom_call.1} parent=1 // pred_fallthru
      _
    // Predicated region
    $region18: #{tpu_custom_call.1} parent=1 // pred_check
      _
    $region19: #{tpu_custom_call.1} parent=1 // pred_check_branch
      %45 = sbr.rel (0) target = $region21
    $region20: #{tpu_custom_call.1} parent=1 // pred_region
      %47 = vsyncadd [#allocation6], 0
      %s49 = sshll.u32 %s4, 4
      %s50 = int_to_ptr.hbm [resolvable:$true] %s49
      %s51 = sshll.u32 [#allocation7], 4
      %s52 = int_to_ptr.vmem [resolvable:$true] %s51
      %54 = dma.hbm_to_vmem [thread:$0]  %s50, 128, %s52, [#allocation6]
    $region21: #{tpu_custom_call.1} parent=1 // pred_fallthru
      _
    // Predicated region
    $region22: #{tpu_custom_call.1} parent=1 // pred_check
      _
    $region23: #{tpu_custom_call.1} parent=1 // pred_check_branch
      %56 = sbr.rel (0) target = $region25
    $region24: #{tpu_custom_call.1} parent=1 // pred_region
      %58 = dma.done [#allocation3], 2048
    $region25: #{tpu_custom_call.1} parent=1 // pred_fallthru
      _
    // Predicated region
    $region26: #{tpu_custom_call.1} parent=1 // pred_check
      _
    $region27: #{tpu_custom_call.1} parent=1 // pred_check_branch
      %60 = sbr.rel (0) target = $region29
    $region28: #{tpu_custom_call.1} parent=1 // pred_region
      %62 = dma.done [#allocation6], 128
    $region29: #{tpu_custom_call.1} parent=1 // pred_fallthru
      _
    // Predicated region
    $region30: #{tpu_custom_call.1} parent=1 // pred_check
      _
    $region31: #{tpu_custom_call.1} parent=1 // pred_check_branch
      %64 = sbr.rel (0) target = $region33
    $region32: #{tpu_custom_call.1} parent=1 // pred_region
      %66 = dma.done [#allocation6], 128
    $region33: #{tpu_custom_call.1} parent=1 // pred_fallthru
      _
    %v67 = vld [vmem:[#allocation2] sm:$0xff]
    %v68 = vld [vmem:[#allocation2 + $0x8] sm:$0xff]
    %v69 = vld [vmem:[#allocation2 + $0x10] sm:$0xff]
    %v70 = vld [vmem:[#allocation2 + $0x18] sm:$0xff]
    %v71 = vld [vmem:[#allocation2 + $0x20] sm:$0xff]
    %v72 = vld [vmem:[#allocation2 + $0x28] sm:$0xff]
    %v73 = vld [vmem:[#allocation2 + $0x30] sm:$0xff]
    %v74 = vld [vmem:[#allocation2 + $0x38] sm:$0xff]
    %v75 = vld [vmem:[#allocation2 + $0x40] sm:$0xff]
    %v76 = vld [vmem:[#allocation2 + $0x48] sm:$0xff]
    %v77 = vld [vmem:[#allocation2 + $0x50] sm:$0xff]
    %v78 = vld [vmem:[#allocation2 + $0x58] sm:$0xff]
    %v79 = vld [vmem:[#allocation2 + $0x60] sm:$0xff]
    %v80 = vld [vmem:[#allocation2 + $0x68] sm:$0xff]
    %v81 = vld [vmem:[#allocation2 + $0x70] sm:$0xff]
    %v82 = vld [vmem:[#allocation2 + $0x78] sm:$0xff]
    %v83 = vld [vmem:[%s2] sm:$0x1]
    %v84 = vld [vmem:[%s2 + $0x1] sm:$0x1]
    %v85 = vld [vmem:[%s2 + $0x2] sm:$0x1]
    %v86 = vld [vmem:[%s2 + $0x3] sm:$0x1]
    %v87 = vld [vmem:[%s2 + $0x4] sm:$0x1]
    %v88 = vld [vmem:[%s2 + $0x5] sm:$0x1]
    %v89 = vld [vmem:[#allocation5] sm:$0xff]
    %v90 = vld [vmem:[#allocation7] sm:$0xff]
    %v91 = vld [vmem:[%s0] sm:$0xff]
    %92 = vmatpush.msra.mxu0 %v82
    %93 = vmatpush.msra.mxu0 %v81
    %94 = vmatpush.msra.mxu0 %v80
    %95 = vmatpush.msra.mxu0 %v79
    %96 = vmatpush.msra.mxu0 %v78
    %97 = vmatpush.msra.mxu0 %v77
    %98 = vmatpush.msra.mxu0 %v76
    %99 = vmatpush.msra.mxu0 %v75
    %100 = vmatpush.msra.mxu0 %v74
    %101 = vmatpush.msra.mxu0 %v73
    %102 = vmatpush.msra.mxu0 %v72
    %103 = vmatpush.msra.mxu0 %v71
    %104 = vmatpush.msra.mxu0 %v70
    %105 = vmatpush.msra.mxu0 %v69
    %106 = vmatpush.msra.mxu0 %v68
    %107 = vmatpush.msra.mxu0 %v67
    %108 = vmatmul.f32.gmra.mxu0 %v90
    %v109 = vpop.f32.mrf.mxu0
    %v110 = vadd.f32 %v91, %v109
    %111 = vdwg.mxu0
    %v112 = vtanh.pop %v110
    %v113 = vperm.slane %v83, 0
    %v114 = vmul.f32 %v113, %v112
    %v115 = vperm.slane %v84, 0
    %v116 = vmul.f32 %v115, %v89
    %v117 = vadd.f32 %v114, %v116
    %v118 = vperm.slane %v85, 0
    %v119 = vmul.f32 %v118, %v90
    %v120 = vadd.f32 %v117, %v119
    %v121 = vperm.slane %v86, 0
    %v122 = vmul.f32 %v121, %v112
    %v123 = vperm.slane %v87, 0
    %v124 = vmul.f32 %v123, %v89
    %v125 = vadd.f32 %v122, %v124
    %v126 = vperm.slane %v88, 0
    %v127 = vmul.f32 %v126, %v90
    %v128 = vadd.f32 %v125, %v127
    %129 = vmatpush.msra.mxu0 %v82
    %130 = vmatpush.msra.mxu0 %v81
    %131 = vmatpush.msra.mxu0 %v80
    %132 = vmatpush.msra.mxu0 %v79
    %133 = vmatpush.msra.mxu0 %v78
    %134 = vmatpush.msra.mxu0 %v77
    %135 = vmatpush.msra.mxu0 %v76
    %136 = vmatpush.msra.mxu0 %v75
    %137 = vmatpush.msra.mxu0 %v74
    %138 = vmatpush.msra.mxu0 %v73
    %139 = vmatpush.msra.mxu0 %v72
    %140 = vmatpush.msra.mxu0 %v71
    %141 = vmatpush.msra.mxu0 %v70
    %142 = vmatpush.msra.mxu0 %v69
    %143 = vmatpush.msra.mxu0 %v68
    %144 = vmatpush.msra.mxu0 %v67
    %145 = vmatmul.f32.gmra.mxu0 %v128
    %v146 = vpop.f32.mrf.mxu0
    %v147 = vadd.f32 %v91, %v146
    %148 = vdwg.mxu0
    %v149 = vtanh.pop %v147
    %v150 = vmul.f32 %v113, %v149
    %v151 = vmul.f32 %v115, %v120
    %v152 = vadd.f32 %v150, %v151
    %v153 = vmul.f32 %v118, %v128
    %v154 = vadd.f32 %v152, %v153
    %v155 = vmul.f32 %v121, %v149
    %v156 = vmul.f32 %v123, %v120
    %v157 = vadd.f32 %v155, %v156
    %v158 = vmul.f32 %v126, %v128
    %v159 = vadd.f32 %v157, %v158
    %160 = vmatpush.msra.mxu0 %v82
    %161 = vmatpush.msra.mxu0 %v81
    %162 = vmatpush.msra.mxu0 %v80
    %163 = vmatpush.msra.mxu0 %v79
    %164 = vmatpush.msra.mxu0 %v78
    %165 = vmatpush.msra.mxu0 %v77
    %166 = vmatpush.msra.mxu0 %v76
    %167 = vmatpush.msra.mxu0 %v75
    %168 = vmatpush.msra.mxu0 %v74
    %169 = vmatpush.msra.mxu0 %v73
    %170 = vmatpush.msra.mxu0 %v72
    %171 = vmatpush.msra.mxu0 %v71
    %172 = vmatpush.msra.mxu0 %v70
    %173 = vmatpush.msra.mxu0 %v69
    %174 = vmatpush.msra.mxu0 %v68
    %175 = vmatpush.msra.mxu0 %v67
    %176 = vmatmul.f32.gmra.mxu0 %v159
    %v177 = vpop.f32.mrf.mxu0
    %v178 = vadd.f32 %v91, %v177
    %179 = vdwg.mxu0
    %v180 = vtanh.pop %v178
    %v181 = vmul.f32 %v113, %v180
    %v182 = vmul.f32 %v115, %v154
    %v183 = vadd.f32 %v181, %v182
    %v184 = vmul.f32 %v118, %v159
    %v185 = vadd.f32 %v183, %v184
    %v186 = vmul.f32 %v121, %v180
    %v187 = vmul.f32 %v123, %v154
    %v188 = vadd.f32 %v186, %v187
    %v189 = vmul.f32 %v126, %v159
    %v190 = vadd.f32 %v188, %v189
    %191 = vmatpush.msra.mxu0 %v82
    %192 = vmatpush.msra.mxu0 %v81
    %193 = vmatpush.msra.mxu0 %v80
    %194 = vmatpush.msra.mxu0 %v79
    %195 = vmatpush.msra.mxu0 %v78
    %196 = vmatpush.msra.mxu0 %v77
    %197 = vmatpush.msra.mxu0 %v76
    %198 = vmatpush.msra.mxu0 %v75
    %199 = vmatpush.msra.mxu0 %v74
    %200 = vmatpush.msra.mxu0 %v73
    %201 = vmatpush.msra.mxu0 %v72
    %202 = vmatpush.msra.mxu0 %v71
    %203 = vmatpush.msra.mxu0 %v70
    %204 = vmatpush.msra.mxu0 %v69
    %205 = vmatpush.msra.mxu0 %v68
    %206 = vmatpush.msra.mxu0 %v67
    %207 = vmatmul.f32.gmra.mxu0 %v190
    %v208 = vpop.f32.mrf.mxu0
    %v209 = vadd.f32 %v91, %v208
    %210 = vdwg.mxu0
    %v211 = vtanh.pop %v209
    %v212 = vmul.f32 %v113, %v211
    %v213 = vmul.f32 %v115, %v185
    %v214 = vadd.f32 %v212, %v213
    %v215 = vmul.f32 %v118, %v190
    %v216 = vadd.f32 %v214, %v215
    %v217 = vmul.f32 %v121, %v211
    %v218 = vmul.f32 %v123, %v185
    %v219 = vadd.f32 %v217, %v218
    %v220 = vmul.f32 %v126, %v190
    %v221 = vadd.f32 %v219, %v220
    %222 = vmatpush.msra.mxu0 %v82
    %223 = vmatpush.msra.mxu0 %v81
    %224 = vmatpush.msra.mxu0 %v80
    %225 = vmatpush.msra.mxu0 %v79
    %226 = vmatpush.msra.mxu0 %v78
    %227 = vmatpush.msra.mxu0 %v77
    %228 = vmatpush.msra.mxu0 %v76
    %229 = vmatpush.msra.mxu0 %v75
    %230 = vmatpush.msra.mxu0 %v74
    %231 = vmatpush.msra.mxu0 %v73
    %232 = vmatpush.msra.mxu0 %v72
    %233 = vmatpush.msra.mxu0 %v71
    %234 = vmatpush.msra.mxu0 %v70
    %235 = vmatpush.msra.mxu0 %v69
    %236 = vmatpush.msra.mxu0 %v68
    %237 = vmatpush.msra.mxu0 %v67
    %238 = vmatmul.f32.gmra.mxu0 %v221
    %v239 = vpop.f32.mrf.mxu0
    %v240 = vadd.f32 %v91, %v239
    %241 = vdwg.mxu0
    %v242 = vtanh.pop %v240
    %v243 = vmul.f32 %v113, %v242
    %v244 = vmul.f32 %v115, %v216
    %v245 = vadd.f32 %v243, %v244
    %v246 = vmul.f32 %v118, %v221
    %v247 = vadd.f32 %v245, %v246
    %v248 = vmul.f32 %v121, %v242
    %v249 = vmul.f32 %v123, %v216
    %v250 = vadd.f32 %v248, %v249
    %v251 = vmul.f32 %v126, %v221
    %v252 = vadd.f32 %v250, %v251
    %253 = vst [vmem:[#allocation8] sm:$0xff] %v247
    %254 = vst [vmem:[#allocation9] sm:$0xff] %v252
    // Predicated region
    $region34: #{tpu_custom_call.1} parent=1 // pred_check
      _
    $region35: #{tpu_custom_call.1} parent=1 // pred_check_branch
      %256 = sbr.rel (0) target = $region37
    $region36: #{tpu_custom_call.1} parent=1 // pred_region
      %258 = vsyncadd [#allocation4], 0
      %s260 = sshll.u32 [#allocation8], 4
      %s261 = int_to_ptr.vmem [resolvable:$true] %s260
      %s262 = sshll.u32 %s5, 4
      %s263 = int_to_ptr.hbm [resolvable:$true] %s262
      %265 = dma.vmem_to_hbm [thread:$0]  %s261, 128, %s263, [#allocation4]
    $region37: #{tpu_custom_call.1} parent=1 // pred_fallthru
      _
    // Predicated region
    $region38: #{tpu_custom_call.1} parent=1 // pred_check
      _
    $region39: #{tpu_custom_call.1} parent=1 // pred_check_branch
      %267 = sbr.rel (0) target = $region41
    $region40: #{tpu_custom_call.1} parent=1 // pred_region
      %269 = vsyncadd [#allocation10], 0
      %s271 = sshll.u32 [#allocation9], 4
      %s272 = int_to_ptr.vmem [resolvable:$true] %s271
      %s273 = sshll.u32 %s6, 4
      %s274 = int_to_ptr.hbm [resolvable:$true] %s273
      %276 = dma.vmem_to_hbm [thread:$0]  %s272, 128, %s274, [#allocation10]
    $region41: #{tpu_custom_call.1} parent=1 // pred_fallthru
      _
    // Predicated region
    $region42: #{tpu_custom_call.1} parent=1 // pred_check
      _
    $region43: #{tpu_custom_call.1} parent=1 // pred_check_branch
      %278 = sbr.rel (0) target = $region45
    $region44: #{tpu_custom_call.1} parent=1 // pred_region
      %280 = dma.done [#allocation4], 128
    $region45: #{tpu_custom_call.1} parent=1 // pred_fallthru
      _
    // Predicated region
    $region46: #{tpu_custom_call.1} parent=1 // pred_check
      _
    $region47: #{tpu_custom_call.1} parent=1 // pred_check_branch
      %282 = sbr.rel (0) target = $region49
    $region48: #{tpu_custom_call.1} parent=1 // pred_region
      %284 = dma.done [#allocation10], 128
    $region49: #{tpu_custom_call.1} parent=1 // pred_fallthru
      _
    %285 = vsyncpa [#allocation3], 1
    %286 = vsyncpa [#allocation6], 1
    %287 = vsyncpa [#allocation4], 1
    %288 = vsyncpa [#allocation10], 1

</llo_original>
